<compile_context>
chip_gen: v6e
topology: v6e:2x2x1
jax: 0.10.0
libtpu: 0.0.40
codegen_flags: <defaults>
</compile_context>

<pallas_src>
import jax
import jax.numpy as jnp
import numpy as np
from jax.experimental import pallas as pl
from jax.experimental.pallas import tpu as pltpu

IN_SIZE = 64          # per-modality input width
HIDDEN = 16           # hidden width of the six modality linears
POST_FUSION = 64      # output width of p_fusion_layers_{1,2}_m2
POOL = 4              # MaxPool2d(4, stride=4)
N_MOD = 6             # a, v, l, p_a, p_v, p_l

_HPOOLED = N_MOD * HIDDEN            # 96 pool-permuted hidden columns
_HTOTAL = _HPOOLED + HIDDEN          # + natural-order l_h copy -> 112
_OUTER_COLS = 3 * 4 * HIDDEN         # 192 = (U | V | l_h) selection columns
_PAIR_COLS = 2 * 2 * HIDDEN          # 64  = (left | right) selection columns


# ---------------------------------------------------------------- kernel ----
def fusion2_kernel(x_ref, mean_ref, w_in_ref, b_in_ref, e_outer_ref, e_pair_ref,
                   w_out_ref, b_out_ref, out_ref):
    # Fused six 64->16 linears (columns pool-permuted) + natural-order l_h copy.
    h = jnp.dot(x_ref[...], w_in_ref[...], preferred_element_type=jnp.float32)
    h = jax.nn.sigmoid(h + b_in_ref[...])                 # (TB, 112)
    hp = h[:, :_HPOOLED]                                  # pool-permuted hiddens
    l_h = h[:, _HPOOLED:_HTOTAL]                          # l_h, natural order

    # MaxPool1d(4) of all six hidden vectors at once: thanks to the permuted
    # weight columns this is two contiguous-half maxes.
    #   r[:, 4k+g] = max_j h_k[4g+j]
    t1 = jnp.maximum(hp[:, :48], hp[:, 48:96])
    r = jnp.maximum(t1[:, :24], t1[:, 24:48])             # (TB, 24)

    # Four l_h-weighted pooled outer products, built with one 0/1-selection
    # matmul on the (otherwise idle) MXU.  Result layout is pool-permuted so the
    # next pooling is again two contiguous-half maxes.
    s = jnp.concatenate([r, l_h], axis=1)                 # (TB, 40)
    a3 = jnp.dot(s, e_outer_ref[...], preferred_element_type=jnp.float32)  # (TB,192)
    gp = a3[:, 0:64] * a3[:, 64:128] * a3[:, 128:192]     # (TB, 64)

    # Second-level MaxPool1d(4) of the four 16-wide fusion vectors.
    t2 = jnp.maximum(gp[:, :32], gp[:, 32:64])
    pg = jnp.maximum(t2[:, :16], t2[:, 16:32])            # (TB, 16)

    # Final two outer products via a second selection matmul.
    pair = jnp.dot(pg, e_pair_ref[...], preferred_element_type=jnp.float32)  # (TB,64)
    fin = pair[:, 0:32] * pair[:, 32:64]                  # (TB, 32)

    # Fused p_fusion_layers_{1,2}_m2 + leaky_relu + 3-way mean with `mean`.
    f = jnp.dot(fin, w_out_ref[...], preferred_element_type=jnp.float32)
    f = f + b_out_ref[...]
    f = jnp.where(f >= 0.0, f, 0.01 * f)                  # leaky_relu(0.01)
    out_ref[...] = (f[:, 0:POST_FUSION] + f[:, POST_FUSION:2 * POST_FUSION]
                    + mean_ref[...]) * (1.0 / 3.0)


# ------------------------------------------------------------ param packing --
def pack_params(params):
    """Pack the 8 (w, b) pairs into 6 kernel arrays (block-diag / selection)."""
    ((wa, ba), (wv, bv), (wl, bl),
     (wap, bap), (wvp, bvp), (wlp, blp),
     (w1, b1), (w2, b2)) = [(np.asarray(w), np.asarray(b)) for (w, b) in params]
    ws = [wa, wv, wl, wap, wvp, wlp]
    bs = [ba, bv, bl, bap, bvp, blp]

    # Fused input linear: block-diagonal, columns permuted so that column
    # 24*j + 4*k + g holds hidden feature (vector k, pool group g, offset j).
    w_in = np.zeros((N_MOD * IN_SIZE, _HTOTAL), np.float32)
    b_in = np.zeros((1, _HTOTAL), np.float32)
    for k in range(N_MOD):
        for g in range(POOL):
            for j in range(POOL):
                col = 24 * j + 4 * k + g
                w_in[IN_SIZE * k:IN_SIZE * (k + 1), col] = ws[k][:, 4 * g + j]
                b_in[0, col] = bs[k][0, 4 * g + j]
    # Natural-order copy of the l hidden (for the element-wise re-weighting).
    w_in[2 * IN_SIZE:3 * IN_SIZE, _HPOOLED:_HTOTAL] = ws[2]
    b_in[0, _HPOOLED:_HTOTAL] = bs[2][0]

    # Selection matrix producing the three 64-wide factors of
    #   Gp[:, 16*jj + 4*m + i] = pool_left_m[i] * pool_right_m[jj] * l_h[4i+jj]
    # from S = [r (24) | l_h (16)].
    k_left = [0, 1, 3, 4]      # a, v, p_a, p_v
    k_right = [1, 2, 5, 5]     # v, l, p_l, p_l
    e_outer = np.zeros((POOL * N_MOD + HIDDEN, _OUTER_COLS), np.float32)
    for jj in range(POOL):
        for m in range(4):
            for i in range(POOL):
                col = 16 * jj + 4 * m + i
                e_outer[4 * k_left[m] + i, col] = 1.0            # U block
                e_outer[4 * k_right[m] + jj, 64 + col] = 1.0     # V block
                e_outer[24 + 4 * i + jj, 128 + col] = 1.0        # l_h block

    # Selection matrix for the two final outer products from PG (16 wide):
    #   F[:, 16*b + 4*i + j] = PG[:, 8b + i] * PG[:, 8b + 4 + j]
    e_pair = np.zeros((HIDDEN, _PAIR_COLS), np.float32)
    for b in range(2):
        for i in range(POOL):
            for j in range(POOL):
                col = 16 * b + 4 * i + j
                e_pair[8 * b + i, col] = 1.0
                e_pair[8 * b + 4 + j, 32 + col] = 1.0

    # Fused output linear: block-diagonal (32, 128).
    w_out = np.zeros((2 * HIDDEN, 2 * POST_FUSION), np.float32)
    w_out[0:HIDDEN, 0:POST_FUSION] = w1
    w_out[HIDDEN:2 * HIDDEN, POST_FUSION:2 * POST_FUSION] = w2
    b_out = np.concatenate([b1, b2], axis=1).astype(np.float32)

    return tuple(jnp.asarray(t) for t in (w_in, b_in, e_outer, e_pair, w_out, b_out))


# --------------------------------------------------------------- wrapper ----
def fusion2_forward(inputs, params, *, tile_b=None):
    a, v, l, p_a, p_v, p_l, mean = inputs
    B = a.shape[0]
    x = jnp.concatenate([a, v, l, p_a, p_v, p_l], axis=1)   # (B, 384)
    w_in, b_in, e_outer, e_pair, w_out, b_out = pack_params(params)

    if tile_b is None:
        # Tiny per-tile footprint (< 2 MiB at tile_b=512) -> fits the default
        # scoped VMEM limit on v5e/v6e/v7x; no vmem_limit override needed.
        tile_b = min(512, max(8, -(-B // 8) * 8))
    grid = (pl.cdiv(B, tile_b),)

    row_map = lambda i: (i, 0)
    const_map = lambda i: (0, 0)

    return pl.pallas_call(
        fusion2_kernel,
        out_shape=jax.ShapeDtypeStruct((B, POST_FUSION), jnp.float32),
        grid=grid,
        in_specs=[
            pl.BlockSpec((tile_b, N_MOD * IN_SIZE), row_map),                 # x
            pl.BlockSpec((tile_b, POST_FUSION), row_map),                     # mean
            pl.BlockSpec((N_MOD * IN_SIZE, _HTOTAL), const_map),              # w_in
            pl.BlockSpec((1, _HTOTAL), const_map),                            # b_in
            pl.BlockSpec((POOL * N_MOD + HIDDEN, _OUTER_COLS), const_map),    # e_outer
            pl.BlockSpec((HIDDEN, _PAIR_COLS), const_map),                    # e_pair
            pl.BlockSpec((2 * HIDDEN, 2 * POST_FUSION), const_map),           # w_out
            pl.BlockSpec((1, 2 * POST_FUSION), const_map),                    # b_out
        ],
        out_specs=pl.BlockSpec((tile_b, POST_FUSION), row_map),
        compiler_params=pltpu.CompilerParams(
            dimension_semantics=("parallel",)),
    )(x, mean, w_in, b_in, e_outer, e_pair, w_out, b_out)


# ----------------------------------------------------- plain-JAX reference --
def fusion2_reference(inputs, params):
    a, v, l, p_a, p_v, p_l, mean = inputs
    ((wa, ba), (wv, bv), (wl, bl),
     (wap, bap), (wvp, bvp), (wlp, blp),
     (w1, b1), (w2, b2)) = params

    def lin_sig(x, w, b):
        return jax.nn.sigmoid(x @ w + b)

    def maxpool2d(m):  # literal MaxPool2d(4, stride=4) on (B, 16, 16)
        B = m.shape[0]
        return m.reshape(B, 4, 4, 4, 4).max(axis=(2, 4))

    def leaky_relu(x):
        return jnp.where(x >= 0, x, 0.01 * x)

    a_h, v_h, l_h = lin_sig(a, wa, ba), lin_sig(v, wv, bv), lin_sig(l, wl, bl)
    B = a_h.shape[0]

    fva = maxpool2d(a_h[:, :, None] * v_h[:, None, :]).reshape(B, 16)
    fvt = maxpool2d(v_h[:, :, None] * l_h[:, None, :]).reshape(B, 16)
    fva, fvt = l_h * fva, l_h * fvt
    f1 = maxpool2d(fva[:, :, None] * fvt[:, None, :]).reshape(B, 16)
    f1 = leaky_relu(f1 @ w1 + b1)

    pa_h = lin_sig(p_a, wap, bap)
    pv_h = lin_sig(p_v, wvp, bvp)
    pl_h = lin_sig(p_l, wlp, blp)
    fva2 = maxpool2d(pa_h[:, :, None] * pl_h[:, None, :]).reshape(B, 16)
    fvt2 = maxpool2d(pv_h[:, :, None] * pl_h[:, None, :]).reshape(B, 16)
    fva2, fvt2 = l_h * fva2, l_h * fvt2
    f2 = maxpool2d(fva2[:, :, None] * fvt2[:, None, :]).reshape(B, 16)
    f2 = leaky_relu(f2 @ w2 + b2)

    return (f1 + f2 + mean) / 3.0


# ------------------------------------------------------------------ setup ---
def init_linear(key, fan_in, fan_out):
    # Deterministic PyTorch-style uniform(-1/sqrt(fan_in), 1/sqrt(fan_in)).
    kw, kb = jax.random.split(key)
    bound = 1.0 / np.sqrt(fan_in)
    w = jax.random.uniform(kw, (fan_in, fan_out), jnp.float32, -bound, bound)
    b = jax.random.uniform(kb, (1, fan_out), jnp.float32, -bound, bound)
    return w, b


if __name__ == "__main__":
    key = jax.random.PRNGKey(0)
    B = 32          # batch; tile_b=8 below -> grid of 4 steps (pipelined)

    k_in, k_par = jax.random.split(key)
    ki = jax.random.split(k_in, 7)
    a = jax.random.normal(ki[0], (B, IN_SIZE), jnp.float32)
    v = jax.random.normal(ki[1], (B, IN_SIZE), jnp.float32)
    l = jax.random.normal(ki[2], (B, IN_SIZE), jnp.float32)
    p_a = jax.random.normal(ki[3], (B, IN_SIZE), jnp.float32)
    p_v = jax.random.normal(ki[4], (B, IN_SIZE), jnp.float32)
    p_l = jax.random.normal(ki[5], (B, IN_SIZE), jnp.float32)
    mean = jax.random.normal(ki[6], (B, POST_FUSION), jnp.float32)
    inputs = (a, v, l, p_a, p_v, p_l, mean)

    kp = jax.random.split(k_par, 8)
    params = [
        init_linear(kp[0], IN_SIZE, HIDDEN),    # linear_a
        init_linear(kp[1], IN_SIZE, HIDDEN),    # linear_v
        init_linear(kp[2], IN_SIZE, HIDDEN),    # linear_l
        init_linear(kp[3], IN_SIZE, HIDDEN),    # linear_ap
        init_linear(kp[4], IN_SIZE, HIDDEN),    # linear_vp
        init_linear(kp[5], IN_SIZE, HIDDEN),    # linear_lp
        init_linear(kp[6], HIDDEN ** 4 // POOL ** 6, POST_FUSION),  # p_fusion_layers_1_m2
        init_linear(kp[7], HIDDEN ** 4 // POOL ** 6, POST_FUSION),  # p_fusion_layers_2_m2
    ]
    # TODO(synk): remaining __init__ submodules (TransformerEncoders, normGate2,
    # fc1/fc2, linear_mean, etc.) are never used in Fusion2.forward, so they are
    # not built.

    out = fusion2_forward(inputs, params, tile_b=8)
    out = jax.block_until_ready(out)

    ref = fusion2_reference(inputs, params)
    # 1e-4 tolerance: the pooling/outer math is exact, but the fused/selection
    # matmuls go through the MXU's f32 multi-pass path and differ from XLA's
    # reference dot at the ~1e-5 level.
    np.testing.assert_allclose(np.asarray(out), np.asarray(ref),
                               rtol=1e-4, atol=1e-4)
    assert out.shape == (B, POST_FUSION)
    print("KERNEL_OK")
</pallas_src>

<mosaic_0001>
module attributes {stable_mosaic.version = 11 : i64} {
  func.func @fusion2_kernel(%arg0: i32, %arg1: memref<8x384xf32, #tpu.memory_space<vmem>>, %arg2: memref<8x64xf32, #tpu.memory_space<vmem>>, %arg3: memref<384x112xf32, #tpu.memory_space<vmem>>, %arg4: memref<1x112xf32, #tpu.memory_space<vmem>>, %arg5: memref<40x192xf32, #tpu.memory_space<vmem>>, %arg6: memref<16x64xf32, #tpu.memory_space<vmem>>, %arg7: memref<32x128xf32, #tpu.memory_space<vmem>>, %arg8: memref<1x128xf32, #tpu.memory_space<vmem>>, %arg9: memref<8x64xf32, #tpu.memory_space<vmem>>) attributes {dimension_semantics = [#tpu.dimension_semantics<parallel>], iteration_bounds = array<i64: 4>, scalar_prefetch = 0 : i64, scratch_operands = 0 : i64, tpu.core_type = #tpu.core_type<tc>, window_params = [{transform_indices = @transform_0, window_bounds = array<i64: 8, 384>}, {transform_indices = @transform_1, window_bounds = array<i64: 8, 64>}, {pipeline_mode = #tpu.pipeline_mode<synchronous>, transform_indices = @transform_2, window_bounds = array<i64: 384, 112>}, {pipeline_mode = #tpu.pipeline_mode<synchronous>, transform_indices = @transform_3, window_bounds = array<i64: 1, 112>}, {pipeline_mode = #tpu.pipeline_mode<synchronous>, transform_indices = @transform_4, window_bounds = array<i64: 40, 192>}, {pipeline_mode = #tpu.pipeline_mode<synchronous>, transform_indices = @transform_5, window_bounds = array<i64: 16, 64>}, {pipeline_mode = #tpu.pipeline_mode<synchronous>, transform_indices = @transform_6, window_bounds = array<i64: 32, 128>}, {pipeline_mode = #tpu.pipeline_mode<synchronous>, transform_indices = @transform_7, window_bounds = array<i64: 1, 128>}, {transform_indices = @transform_8, window_bounds = array<i64: 8, 64>}]} {
    %c0 = arith.constant 0 : index
    %c0_0 = arith.constant 0 : index
    %0 = vector.load %arg1[%c0, %c0_0] : memref<8x384xf32, #tpu.memory_space<vmem>>, vector<8x384xf32>
    %c0_1 = arith.constant 0 : index
    %c0_2 = arith.constant 0 : index
    %1 = vector.load %arg3[%c0_1, %c0_2] : memref<384x112xf32, #tpu.memory_space<vmem>>, vector<384x112xf32>
    %cst = arith.constant dense<0.000000e+00> : vector<8x112xf32>
    %2 = tpu.matmul %0, %1, %cst {dimension_numbers = #tpu.dot_dimension_numbers<[1], [0], [0], [1], [0, 0, 1, 1], [], []>} : vector<8x384xf32>, vector<384x112xf32>, vector<8x112xf32> -> vector<8x112xf32>
    %c0_3 = arith.constant 0 : index
    %c0_4 = arith.constant 0 : index
    %3 = vector.load %arg4[%c0_3, %c0_4] : memref<1x112xf32, #tpu.memory_space<vmem>>, vector<1x112xf32>
    %4 = vector.broadcast %3 : vector<1x112xf32> to vector<8x112xf32>
    %5 = arith.addf %2, %4 : vector<8x112xf32>
    %6 = arith.negf %5 : vector<8x112xf32>
    %7 = math.exp %6 : vector<8x112xf32>
    %cst_5 = arith.constant 1.000000e+00 : f32
    %8 = vector.broadcast %cst_5 : f32 to vector<8x112xf32>
    %9 = arith.addf %8, %7 : vector<8x112xf32>
    %10 = arith.divf %8, %9 : vector<8x112xf32>
    %11 = vector.extract_strided_slice %10 {offsets = [0, 0], sizes = [8, 96], strides = [1, 1]} : vector<8x112xf32> to vector<8x96xf32>
    %12 = vector.extract_strided_slice %10 {offsets = [0, 96], sizes = [8, 16], strides = [1, 1]} : vector<8x112xf32> to vector<8x16xf32>
    %13 = vector.extract_strided_slice %11 {offsets = [0, 0], sizes = [8, 48], strides = [1, 1]} : vector<8x96xf32> to vector<8x48xf32>
    %14 = vector.extract_strided_slice %11 {offsets = [0, 48], sizes = [8, 48], strides = [1, 1]} : vector<8x96xf32> to vector<8x48xf32>
    %15 = arith.maximumf %13, %14 : vector<8x48xf32>
    %16 = vector.extract_strided_slice %15 {offsets = [0, 0], sizes = [8, 24], strides = [1, 1]} : vector<8x48xf32> to vector<8x24xf32>
    %17 = vector.extract_strided_slice %15 {offsets = [0, 24], sizes = [8, 24], strides = [1, 1]} : vector<8x48xf32> to vector<8x24xf32>
    %18 = arith.maximumf %16, %17 : vector<8x24xf32>
    %19 = tpu.concatenate %18, %12 in 1 : vector<8x24xf32>, vector<8x16xf32> -> vector<8x40xf32>
    %c0_6 = arith.constant 0 : index
    %c0_7 = arith.constant 0 : index
    %20 = vector.load %arg5[%c0_6, %c0_7] : memref<40x192xf32, #tpu.memory_space<vmem>>, vector<40x192xf32>
    %cst_8 = arith.constant dense<0.000000e+00> : vector<8x192xf32>
    %21 = tpu.matmul %19, %20, %cst_8 {dimension_numbers = #tpu.dot_dimension_numbers<[1], [0], [0], [1], [0, 0, 1, 1], [], []>} : vector<8x40xf32>, vector<40x192xf32>, vector<8x192xf32> -> vector<8x192xf32>
    %22 = vector.extract_strided_slice %21 {offsets = [0, 0], sizes = [8, 64], strides = [1, 1]} : vector<8x192xf32> to vector<8x64xf32>
    %23 = vector.extract_strided_slice %21 {offsets = [0, 64], sizes = [8, 64], strides = [1, 1]} : vector<8x192xf32> to vector<8x64xf32>
    %24 = arith.mulf %22, %23 : vector<8x64xf32>
    %25 = vector.extract_strided_slice %21 {offsets = [0, 128], sizes = [8, 64], strides = [1, 1]} : vector<8x192xf32> to vector<8x64xf32>
    %26 = arith.mulf %24, %25 : vector<8x64xf32>
    %27 = vector.extract_strided_slice %26 {offsets = [0, 0], sizes = [8, 32], strides = [1, 1]} : vector<8x64xf32> to vector<8x32xf32>
    %28 = vector.extract_strided_slice %26 {offsets = [0, 32], sizes = [8, 32], strides = [1, 1]} : vector<8x64xf32> to vector<8x32xf32>
    %29 = arith.maximumf %27, %28 : vector<8x32xf32>
    %30 = vector.extract_strided_slice %29 {offsets = [0, 0], sizes = [8, 16], strides = [1, 1]} : vector<8x32xf32> to vector<8x16xf32>
    %31 = vector.extract_strided_slice %29 {offsets = [0, 16], sizes = [8, 16], strides = [1, 1]} : vector<8x32xf32> to vector<8x16xf32>
    %32 = arith.maximumf %30, %31 : vector<8x16xf32>
    %c0_9 = arith.constant 0 : index
    %c0_10 = arith.constant 0 : index
    %33 = vector.load %arg6[%c0_9, %c0_10] : memref<16x64xf32, #tpu.memory_space<vmem>>, vector<16x64xf32>
    %cst_11 = arith.constant dense<0.000000e+00> : vector<8x64xf32>
    %34 = tpu.matmul %32, %33, %cst_11 {dimension_numbers = #tpu.dot_dimension_numbers<[1], [0], [0], [1], [0, 0, 1, 1], [], []>} : vector<8x16xf32>, vector<16x64xf32>, vector<8x64xf32> -> vector<8x64xf32>
    %35 = vector.extract_strided_slice %34 {offsets = [0, 0], sizes = [8, 32], strides = [1, 1]} : vector<8x64xf32> to vector<8x32xf32>
    %36 = vector.extract_strided_slice %34 {offsets = [0, 32], sizes = [8, 32], strides = [1, 1]} : vector<8x64xf32> to vector<8x32xf32>
    %37 = arith.mulf %35, %36 : vector<8x32xf32>
    %c0_12 = arith.constant 0 : index
    %c0_13 = arith.constant 0 : index
    %38 = vector.load %arg7[%c0_12, %c0_13] : memref<32x128xf32, #tpu.memory_space<vmem>>, vector<32x128xf32>
    %cst_14 = arith.constant dense<0.000000e+00> : vector<8x128xf32>
    %39 = tpu.matmul %37, %38, %cst_14 {dimension_numbers = #tpu.dot_dimension_numbers<[1], [0], [0], [1], [0, 0, 1, 1], [], []>} : vector<8x32xf32>, vector<32x128xf32>, vector<8x128xf32> -> vector<8x128xf32>
    %c0_15 = arith.constant 0 : index
    %c0_16 = arith.constant 0 : index
    %40 = vector.load %arg8[%c0_15, %c0_16] : memref<1x128xf32, #tpu.memory_space<vmem>>, vector<1x128xf32>
    %41 = vector.broadcast %40 : vector<1x128xf32> to vector<8x128xf32>
    %42 = arith.addf %39, %41 : vector<8x128xf32>
    %cst_17 = arith.constant 0.000000e+00 : f32
    %43 = vector.broadcast %cst_17 : f32 to vector<8x128xf32>
    %44 = arith.cmpf oge, %42, %43 : vector<8x128xf32>
    %cst_18 = arith.constant 0.00999999977 : f32
    %45 = vector.broadcast %cst_18 : f32 to vector<8x128xf32>
    %46 = arith.mulf %45, %42 : vector<8x128xf32>
    %47 = arith.select %44, %42, %46 : vector<8x128xi1>, vector<8x128xf32>
    %48 = vector.extract_strided_slice %47 {offsets = [0, 0], sizes = [8, 64], strides = [1, 1]} : vector<8x128xf32> to vector<8x64xf32>
    %49 = vector.extract_strided_slice %47 {offsets = [0, 64], sizes = [8, 64], strides = [1, 1]} : vector<8x128xf32> to vector<8x64xf32>
    %50 = arith.addf %48, %49 : vector<8x64xf32>
    %c0_19 = arith.constant 0 : index
    %c0_20 = arith.constant 0 : index
    %51 = vector.load %arg2[%c0_19, %c0_20] : memref<8x64xf32, #tpu.memory_space<vmem>>, vector<8x64xf32>
    %52 = arith.addf %50, %51 : vector<8x64xf32>
    %cst_21 = arith.constant 0.333333343 : f32
    %53 = vector.broadcast %cst_21 : f32 to vector<8x64xf32>
    %54 = arith.mulf %52, %53 : vector<8x64xf32>
    %c0_22 = arith.constant 0 : index
    %c0_23 = arith.constant 0 : index
    %55 = vector.load %arg9[%c0_22, %c0_23] : memref<8x64xf32, #tpu.memory_space<vmem>>, vector<8x64xf32>
    tpu.vector_store %arg9[%c0_22, %c0_23], %54 {strides = array<i32>} : memref<8x64xf32, #tpu.memory_space<vmem>>, vector<8x64xf32>,
    return
  }
  func.func @transform_0(%arg0: i32) -> (i32, i32) {
    %c0_i32 = arith.constant 0 : i32
    %c0_i32_0 = arith.constant 0 : i32
    return %arg0, %c0_i32 : i32, i32
  }
  func.func @transform_1(%arg0: i32) -> (i32, i32) {
    %c0_i32 = arith.constant 0 : i32
    %c0_i32_0 = arith.constant 0 : i32
    return %arg0, %c0_i32 : i32, i32
  }
  func.func @transform_2(%arg0: i32) -> (i32, i32) {
    %c0_i32 = arith.constant 0 : i32
    %c0_i32_0 = arith.constant 0 : i32
    %c0_i32_1 = arith.constant 0 : i32
    return %c0_i32, %c0_i32_0 : i32, i32
  }
  func.func @transform_3(%arg0: i32) -> (i32, i32) {
    %c0_i32 = arith.constant 0 : i32
    %c0_i32_0 = arith.constant 0 : i32
    %c0_i32_1 = arith.constant 0 : i32
    return %c0_i32, %c0_i32_0 : i32, i32
  }
  func.func @transform_4(%arg0: i32) -> (i32, i32) {
    %c0_i32 = arith.constant 0 : i32
    %c0_i32_0 = arith.constant 0 : i32
    %c0_i32_1 = arith.constant 0 : i32
    return %c0_i32, %c0_i32_0 : i32, i32
  }
  func.func @transform_5(%arg0: i32) -> (i32, i32) {
    %c0_i32 = arith.constant 0 : i32
    %c0_i32_0 = arith.constant 0 : i32
    %c0_i32_1 = arith.constant 0 : i32
    return %c0_i32, %c0_i32_0 : i32, i32
  }
  func.func @transform_6(%arg0: i32) -> (i32, i32) {
    %c0_i32 = arith.constant 0 : i32
    %c0_i32_0 = arith.constant 0 : i32
    %c0_i32_1 = arith.constant 0 : i32
    return %c0_i32, %c0_i32_0 : i32, i32
  }
  func.func @transform_7(%arg0: i32) -> (i32, i32) {
    %c0_i32 = arith.constant 0 : i32
    %c0_i32_0 = arith.constant 0 : i32
    %c0_i32_1 = arith.constant 0 : i32
    return %c0_i32, %c0_i32_0 : i32, i32
  }
  func.func @transform_8(%arg0: i32) -> (i32, i32) {
    %c0_i32 = arith.constant 0 : i32
    %c0_i32_0 = arith.constant 0 : i32
    return %arg0, %c0_i32 : i32, i32
  }
}

</mosaic_0001>

<llo_original>
// kernel: tpu_custom_call.1
$region0: #{tpu_custom_call.1}
  #allocation0 [shape = 'u32[]', space=smem, size = 0x4, offset = 0x4, fixed_abs, tag = 'smem constant byte address 0x4 - core index']
  #allocation1 [shape = 'u32[144,128]{1,0:T(1,128)}', space=vmem, size = 0x12000, scoped, tag = 'internal scratch']
  %s0 = inlined_call_operand.vmem [shape: f32[32,384], index: 0, kind: input, shape index: {}]
  %s1 = inlined_call_operand.vmem [shape: f32[32,64], index: 1, kind: input, shape index: {}]
  %s2 = inlined_call_operand.vmem [shape: f32[384,112], index: 2, kind: input, shape index: {}]
  %s3 = inlined_call_operand.vmem [shape: f32[1,112], index: 3, kind: input, shape index: {}]
  %s4 = inlined_call_operand.vmem [shape: f32[40,192], index: 4, kind: input, shape index: {}]
  %s5 = inlined_call_operand.vmem [shape: f32[16,64], index: 5, kind: input, shape index: {}]
  %s6 = inlined_call_operand.vmem [shape: f32[32,128], index: 6, kind: input, shape index: {}]
  %s7 = inlined_call_operand.vmem [shape: f32[1,128], index: 7, kind: input, shape index: {}]
  %s8 = inlined_call_operand.hbm [shape: f32[32,64], index: 8, kind: output, shape index: {}]
  %s9 = sld [smem:[#allocation0]]
  $region65: #{tpu_custom_call.1} parent=0
    _
  %s11 = ssub.s32 1, %s9
  %s12 = scalar_select 0, %s11, %s9
  $region1: #{tpu_custom_call.1} parent=0
    #allocation2 [shape = 'u8[8192]{0}', space=vmem, size = 0x2000, scoped, tag = 'output window, operand 0']
    #allocation3 [shape = 's32[2]{0}', space=sflag, size = 0x8, scoped, tag = 'scoped memory for tpu_custom_call.1']
    %13 = vsyncpa [#allocation3], 0
    %s14 = scalar_lea.sflag [#allocation3], 1
    %15 = vsyncpa %s14, 0
    loop: start=0, step=1, limit=6
    $region2: #{tpu_custom_call.1} parent=1 // loop_pre_header
      _
    $region3: #{tpu_custom_call.1} parent=1 // loop_header
      %s17 = sphi 0, %s21
      %p18 = scmp.ge.s32.totalorder %s17, 6
      %s27 = sphi 0, %s29
      %s30 = sphi 0, %s27
      %s31 = sphi 0, %s30
      %s47 = sphi 0, %s31
      %s53 = sphi 0, %s55
      %s56 = sphi 0, %s53
      %s57 = sphi 0, %s56
      %s73 = sphi 0, %s57
      %s77 = sphi 0, %s77
      %s79 = sphi 0, %s77
      %s80 = sphi 0, %s79
      %s94 = sphi 0, %s80
      %s98 = sphi 0, %s98
      %s100 = sphi 0, %s98
      %s101 = sphi 0, %s100
      %s115 = sphi 0, %s101
      %s119 = sphi 0, %s119
      %s121 = sphi 0, %s119
      %s122 = sphi 0, %s121
      %s136 = sphi 0, %s122
      %s140 = sphi 0, %s140
      %s142 = sphi 0, %s140
      %s143 = sphi 0, %s142
      %s157 = sphi 0, %s143
      %s161 = sphi 0, %s161
      %s163 = sphi 0, %s161
      %s164 = sphi 0, %s163
      %s178 = sphi 0, %s164
      %s182 = sphi 0, %s182
      %s184 = sphi 0, %s182
      %s185 = sphi 0, %s184
      %s199 = sphi 0, %s185
      %s205 = sphi 0, %s207
      %s208 = sphi 0, %s205
      %s209 = sphi 0, %s208
      %s225 = sphi 0, %s209
    $region4: #{tpu_custom_call.1} parent=1 // loop_header_branch
      %20 = sbr.rel (%p18) target = $region8
    $region5: #{tpu_custom_call.1} parent=1 // loop_body
      %s22 = ssub.s32 %s17, 1
      %s23 = ssub.s32 %s17, 2
      %s24 = sadd.s32 %s17, 1
      %s25 = ssub.s32 %s17, %s24
      %p26 = scmp.eq.s32.totalorder %s25, 0
      %s28 = sadd.s32 %s27, 1
      %s29 = scalar_select %p26, %s27, %s28
      %p32 = pneg %p26
      %p33 = scmp.eq.s32.totalorder %s17, 3
      %p34 = por %p32, %p33
      %p35 = scmp.ne.s32.totalorder %s27, %s30
      %p36 = scmp.eq.s32.totalorder %s17, 0
      %p37 = por %p35, %p36
      %p38 = scmp.ne.s32.totalorder %s27, %s30
      %p39 = scmp.eq.s32.totalorder %s22, 3
      %p40 = por %p38, %p39
      %p41 = scmp.ne.s32.totalorder %s30, %s31
      %p42 = scmp.eq.s32.totalorder %s22, 0
      %p43 = por %p41, %p42
      %p44 = scmp.ne.s32.totalorder %s30, %s31
      %p45 = scmp.eq.s32.totalorder %s23, 3
      %p46 = por %p44, %p45
      %p48 = scmp.ne.s32.totalorder %s31, %s47
      %p49 = scmp.eq.s32.totalorder %s23, 0
      %p50 = por %p48, %p49
      %s51 = ssub.s32 %s17, %s24
      %p52 = scmp.eq.s32.totalorder %s51, 0
      %s54 = sadd.s32 %s53, 1
      %s55 = scalar_select %p52, %s53, %s54
      %p58 = pneg %p52
      %p59 = scmp.eq.s32.totalorder %s17, 3
      %p60 = por %p58, %p59
      %p61 = scmp.ne.s32.totalorder %s53, %s56
      %p62 = scmp.eq.s32.totalorder %s17, 0
      %p63 = por %p61, %p62
      %p64 = scmp.ne.s32.totalorder %s53, %s56
      %p65 = scmp.eq.s32.totalorder %s22, 3
      %p66 = por %p64, %p65
      %p67 = scmp.ne.s32.totalorder %s56, %s57
      %p68 = scmp.eq.s32.totalorder %s22, 0
      %p69 = por %p67, %p68
      %p70 = scmp.ne.s32.totalorder %s56, %s57
      %p71 = scmp.eq.s32.totalorder %s23, 3
      %p72 = por %p70, %p71
      %p74 = scmp.ne.s32.totalorder %s57, %s73
      %p75 = scmp.eq.s32.totalorder %s23, 0
      %p76 = por %p74, %p75
      %s78 = sadd.s32 %s77, 1
      %p81 = scmp.eq.s32.totalorder %s17, 3
      %p82 = scmp.ne.s32.totalorder %s77, %s79
      %p83 = scmp.eq.s32.totalorder %s17, 0
      %p84 = por %p82, %p83
      %p85 = scmp.ne.s32.totalorder %s77, %s79
      %p86 = scmp.eq.s32.totalorder %s22, 3
      %p87 = por %p85, %p86
      %p88 = scmp.ne.s32.totalorder %s79, %s80
      %p89 = scmp.eq.s32.totalorder %s22, 0
      %p90 = por %p88, %p89
      %p91 = scmp.ne.s32.totalorder %s79, %s80
      %p92 = scmp.eq.s32.totalorder %s23, 3
      %p93 = por %p91, %p92
      %p95 = scmp.ne.s32.totalorder %s80, %s94
      %p96 = scmp.eq.s32.totalorder %s23, 0
      %p97 = por %p95, %p96
      %s99 = sadd.s32 %s98, 1
      %p102 = scmp.eq.s32.totalorder %s17, 3
      %p103 = scmp.ne.s32.totalorder %s98, %s100
      %p104 = scmp.eq.s32.totalorder %s17, 0
      %p105 = por %p103, %p104
      %p106 = scmp.ne.s32.totalorder %s98, %s100
      %p107 = scmp.eq.s32.totalorder %s22, 3
      %p108 = por %p106, %p107
      %p109 = scmp.ne.s32.totalorder %s100, %s101
      %p110 = scmp.eq.s32.totalorder %s22, 0
      %p111 = por %p109, %p110
      %p112 = scmp.ne.s32.totalorder %s100, %s101
      %p113 = scmp.eq.s32.totalorder %s23, 3
      %p114 = por %p112, %p113
      %p116 = scmp.ne.s32.totalorder %s101, %s115
      %p117 = scmp.eq.s32.totalorder %s23, 0
      %p118 = por %p116, %p117
      %s120 = sadd.s32 %s119, 1
      %p123 = scmp.eq.s32.totalorder %s17, 3
      %p124 = scmp.ne.s32.totalorder %s119, %s121
      %p125 = scmp.eq.s32.totalorder %s17, 0
      %p126 = por %p124, %p125
      %p127 = scmp.ne.s32.totalorder %s119, %s121
      %p128 = scmp.eq.s32.totalorder %s22, 3
      %p129 = por %p127, %p128
      %p130 = scmp.ne.s32.totalorder %s121, %s122
      %p131 = scmp.eq.s32.totalorder %s22, 0
      %p132 = por %p130, %p131
      %p133 = scmp.ne.s32.totalorder %s121, %s122
      %p134 = scmp.eq.s32.totalorder %s23, 3
      %p135 = por %p133, %p134
      %p137 = scmp.ne.s32.totalorder %s122, %s136
      %p138 = scmp.eq.s32.totalorder %s23, 0
      %p139 = por %p137, %p138
      %s141 = sadd.s32 %s140, 1
      %p144 = scmp.eq.s32.totalorder %s17, 3
      %p145 = scmp.ne.s32.totalorder %s140, %s142
      %p146 = scmp.eq.s32.totalorder %s17, 0
      %p147 = por %p145, %p146
      %p148 = scmp.ne.s32.totalorder %s140, %s142
      %p149 = scmp.eq.s32.totalorder %s22, 3
      %p150 = por %p148, %p149
      %p151 = scmp.ne.s32.totalorder %s142, %s143
      %p152 = scmp.eq.s32.totalorder %s22, 0
      %p153 = por %p151, %p152
      %p154 = scmp.ne.s32.totalorder %s142, %s143
      %p155 = scmp.eq.s32.totalorder %s23, 3
      %p156 = por %p154, %p155
      %p158 = scmp.ne.s32.totalorder %s143, %s157
      %p159 = scmp.eq.s32.totalorder %s23, 0
      %p160 = por %p158, %p159
      %s162 = sadd.s32 %s161, 1
      %p165 = scmp.eq.s32.totalorder %s17, 3
      %p166 = scmp.ne.s32.totalorder %s161, %s163
      %p167 = scmp.eq.s32.totalorder %s17, 0
      %p168 = por %p166, %p167
      %p169 = scmp.ne.s32.totalorder %s161, %s163
      %p170 = scmp.eq.s32.totalorder %s22, 3
      %p171 = por %p169, %p170
      %p172 = scmp.ne.s32.totalorder %s163, %s164
      %p173 = scmp.eq.s32.totalorder %s22, 0
      %p174 = por %p172, %p173
      %p175 = scmp.ne.s32.totalorder %s163, %s164
      %p176 = scmp.eq.s32.totalorder %s23, 3
      %p177 = por %p175, %p176
      %p179 = scmp.ne.s32.totalorder %s164, %s178
      %p180 = scmp.eq.s32.totalorder %s23, 0
      %p181 = por %p179, %p180
      %s183 = sadd.s32 %s182, 1
      %p186 = scmp.eq.s32.totalorder %s17, 3
      %p187 = scmp.ne.s32.totalorder %s182, %s184
      %p188 = scmp.eq.s32.totalorder %s17, 0
      %p189 = por %p187, %p188
      %p190 = scmp.ne.s32.totalorder %s182, %s184
      %p191 = scmp.eq.s32.totalorder %s22, 3
      %p192 = por %p190, %p191
      %p193 = scmp.ne.s32.totalorder %s184, %s185
      %p194 = scmp.eq.s32.totalorder %s22, 0
      %p195 = por %p193, %p194
      %p196 = scmp.ne.s32.totalorder %s184, %s185
      %p197 = scmp.eq.s32.totalorder %s23, 3
      %p198 = por %p196, %p197
      %p200 = scmp.ne.s32.totalorder %s185, %s199
      %p201 = scmp.eq.s32.totalorder %s23, 0
      %p202 = por %p200, %p201
      %s203 = ssub.s32 %s17, %s24
      %p204 = scmp.eq.s32.totalorder %s203, 0
      %s206 = sadd.s32 %s205, 1
      %s207 = scalar_select %p204, %s205, %s206
      %p210 = pneg %p204
      %p211 = scmp.eq.s32.totalorder %s17, 3
      %p212 = por %p210, %p211
      %p213 = scmp.ne.s32.totalorder %s205, %s208
      %p214 = scmp.eq.s32.totalorder %s17, 0
      %p215 = por %p213, %p214
      %p216 = scmp.ne.s32.totalorder %s205, %s208
      %p217 = scmp.eq.s32.totalorder %s22, 3
      %p218 = por %p216, %p217
      %p219 = scmp.ne.s32.totalorder %s208, %s209
      %p220 = scmp.eq.s32.totalorder %s22, 0
      %p221 = por %p219, %p220
      %p222 = scmp.ne.s32.totalorder %s208, %s209
      %p223 = scmp.eq.s32.totalorder %s23, 3
      %p224 = por %p222, %p223
      %p226 = scmp.ne.s32.totalorder %s209, %s225
      %p227 = scmp.eq.s32.totalorder %s23, 0
      %p228 = por %p226, %p227
      %p229 = scmp.le.s32.totalorder 1, %s17
      %p230 = scmp.lt.s32.totalorder %s17, 5
      %p231 = pnand %p229, %p230
      %p232 = pneg %p231
      // Predicated region
      $region9: #{tpu_custom_call.1} parent=5 // pred_check
        _
      $region10: #{tpu_custom_call.1} parent=5 // pred_check_branch
        %234 = sbr.rel (%p231) target = $region12
      $region11: #{tpu_custom_call.1} parent=5 // pred_region
        %s235 = ssub.s32 %s17, 1
        // Predicated region
        $region13: #{tpu_custom_call.1} parent=11 // pred_check
          %p236 = pneg %p90
        $region14: #{tpu_custom_call.1} parent=11 // pred_check_branch
          %238 = sbr.rel (%p236) target = $region16
        $region15: #{tpu_custom_call.1} parent=11 // pred_region
          _
        $region16: #{tpu_custom_call.1} parent=11 // pred_fallthru
          _
        // Predicated region
        $region17: #{tpu_custom_call.1} parent=11 // pred_check
          %p239 = pneg %p111
        $region18: #{tpu_custom_call.1} parent=11 // pred_check_branch
          %241 = sbr.rel (%p239) target = $region20
        $region19: #{tpu_custom_call.1} parent=11 // pred_region
          _
        $region20: #{tpu_custom_call.1} parent=11 // pred_fallthru
          _
        // Predicated region
        $region21: #{tpu_custom_call.1} parent=11 // pred_check
          %p242 = pneg %p132
        $region22: #{tpu_custom_call.1} parent=11 // pred_check_branch
          %244 = sbr.rel (%p242) target = $region24
        $region23: #{tpu_custom_call.1} parent=11 // pred_region
          _
        $region24: #{tpu_custom_call.1} parent=11 // pred_fallthru
          _
        // Predicated region
        $region25: #{tpu_custom_call.1} parent=11 // pred_check
          %p245 = pneg %p153
        $region26: #{tpu_custom_call.1} parent=11 // pred_check_branch
          %247 = sbr.rel (%p245) target = $region28
        $region27: #{tpu_custom_call.1} parent=11 // pred_region
          _
        $region28: #{tpu_custom_call.1} parent=11 // pred_fallthru
          _
        // Predicated region
        $region29: #{tpu_custom_call.1} parent=11 // pred_check
          %p248 = pneg %p174
        $region30: #{tpu_custom_call.1} parent=11 // pred_check_branch
          %250 = sbr.rel (%p248) target = $region32
        $region31: #{tpu_custom_call.1} parent=11 // pred_region
          _
        $region32: #{tpu_custom_call.1} parent=11 // pred_fallthru
          _
        // Predicated region
        $region33: #{tpu_custom_call.1} parent=11 // pred_check
          %p251 = pneg %p195
        $region34: #{tpu_custom_call.1} parent=11 // pred_check_branch
          %253 = sbr.rel (%p251) target = $region36
        $region35: #{tpu_custom_call.1} parent=11 // pred_region
          _
        $region36: #{tpu_custom_call.1} parent=11 // pred_fallthru
          _
      $region12: #{tpu_custom_call.1} parent=5 // pred_fallthru
        _
      %p254 = scmp.lt.s32.totalorder %s17, 4
      // Predicated region
      $region37: #{tpu_custom_call.1} parent=5 // pred_check
        %p255 = pneg %p254
      $region38: #{tpu_custom_call.1} parent=5 // pred_check_branch
        %257 = sbr.rel (%p255) target = $region40
      $region39: #{tpu_custom_call.1} parent=5 // pred_region
        // Predicated region
        $region41: #{tpu_custom_call.1} parent=39 // pred_check
          %p258 = pneg %p37
        $region42: #{tpu_custom_call.1} parent=39 // pred_check_branch
          %260 = sbr.rel (%p258) target = $region44
        $region43: #{tpu_custom_call.1} parent=39 // pred_region
          %p261 = scmp.lt.s32.totalorder %s17, 3
          %s262 = scalar_select %p261, %s17, 3
          %s263 = smul.addr %s262, 3
          %s264 = smul.addr %s263, 8
          %s265 = scalar_lea.vmem %s0, %s264
        $region44: #{tpu_custom_call.1} parent=39 // pred_fallthru
          _
        // Predicated region
        $region45: #{tpu_custom_call.1} parent=39 // pred_check
          %p266 = pneg %p63
        $region46: #{tpu_custom_call.1} parent=39 // pred_check_branch
          %268 = sbr.rel (%p266) target = $region48
        $region47: #{tpu_custom_call.1} parent=39 // pred_region
          %p269 = scmp.lt.s32.totalorder %s17, 3
          %s270 = scalar_select %p269, %s17, 3
          %s271 = smul.addr %s270, 8
          %s272 = scalar_lea.vmem %s1, %s271
        $region48: #{tpu_custom_call.1} parent=39 // pred_fallthru
          _
      $region40: #{tpu_custom_call.1} parent=5 // pred_fallthru
        _
      %p273 = scmp.le.s32.totalorder 1, %s17
      %p274 = scmp.lt.s32.totalorder %s17, 5
      %p275 = pnand %p273, %p274
      %p276 = pneg %p275
      // Predicated region
      $region49: #{tpu_custom_call.1} parent=5 // pred_check
        _
      $region50: #{tpu_custom_call.1} parent=5 // pred_check_branch
        %278 = sbr.rel (%p275) target = $region52
      $region51: #{tpu_custom_call.1} parent=5 // pred_region
        %s279 = ssub.s32 %s17, 1
        %p280 = scmp.lt.s32.totalorder %s22, 3
        %s281 = scalar_select %p280, %s22, 3
        %s282 = smul.addr %s281, 3
        %s283 = smul.addr %s282, 8
        %s284 = scalar_lea.vmem %s0, %s283
        %p285 = pneg %p43
        %p286 = pneg %p40
        %p287 = scmp.lt.s32.totalorder %s22, 3
        %s288 = scalar_select %p287, %s22, 3
        %s289 = smul.addr %s288, 8
        %s290 = scalar_lea.vmem %s1, %s289
        %p291 = pneg %p69
        %p292 = pneg %p66
        %p293 = pneg %p90
        %p294 = pneg %p87
        %p295 = pneg %p111
        %p296 = pneg %p108
        %p297 = pneg %p132
        %p298 = pneg %p129
        %p299 = pneg %p153
        %p300 = pneg %p150
        %p301 = pneg %p174
        %p302 = pneg %p171
        %p303 = pneg %p195
        %p304 = pneg %p192
        %p305 = pneg %p221
        %p306 = pneg %p218
        %s307 = sand.u32 %s208, 1
        %s308 = scalar_lea.sflag [#allocation3], %s307
        %s309 = sand.u32 %s208, 1
        %s310 = smul.addr %s309, 8
        %s311 = scalar_lea.vmem [#allocation2], %s310
        %p312 = scmp.lt.s32.totalorder %s22, 3
        %s313 = scalar_select %p312, %s22, 3
        %s314 = smul.addr %s313, 3
        %s315 = smul.addr %s314, 8
        %s316 = scalar_lea.vmem %s0, %s315
        %p317 = scmp.lt.s32.totalorder %s22, 3
        %s318 = scalar_select %p317, %s22, 3
        %s319 = smul.addr %s318, 8
        %s320 = scalar_lea.vmem %s1, %s319
        %v321 = vld [vmem:[%s316] sm:$0xff]
        %v322 = vld [vmem:[%s316 + $0x8] sm:$0xff]
        %v323 = vld [vmem:[%s316 + $0x10] sm:$0xff]
        %v324 = vld [vmem:[%s2] sm:$0xff]
        %v325 = vld [vmem:[%s2 + $0x8] sm:$0xff]
        %v326 = vld [vmem:[%s2 + $0x10] sm:$0xff]
        %v327 = vld [vmem:[%s2 + $0x18] sm:$0xff]
        %v328 = vld [vmem:[%s2 + $0x20] sm:$0xff]
        %v329 = vld [vmem:[%s2 + $0x28] sm:$0xff]
        %v330 = vld [vmem:[%s2 + $0x30] sm:$0xff]
        %v331 = vld [vmem:[%s2 + $0x38] sm:$0xff]
        %v332 = vld [vmem:[%s2 + $0x40] sm:$0xff]
        %v333 = vld [vmem:[%s2 + $0x48] sm:$0xff]
        %v334 = vld [vmem:[%s2 + $0x50] sm:$0xff]
        %v335 = vld [vmem:[%s2 + $0x58] sm:$0xff]
        %v336 = vld [vmem:[%s2 + $0x60] sm:$0xff]
        %v337 = vld [vmem:[%s2 + $0x68] sm:$0xff]
        %v338 = vld [vmem:[%s2 + $0x70] sm:$0xff]
        %v339 = vld [vmem:[%s2 + $0x78] sm:$0xff]
        %v340 = vld [vmem:[%s2 + $0x80] sm:$0xff]
        %v341 = vld [vmem:[%s2 + $0x88] sm:$0xff]
        %v342 = vld [vmem:[%s2 + $0x90] sm:$0xff]
        %v343 = vld [vmem:[%s2 + $0x98] sm:$0xff]
        %v344 = vld [vmem:[%s2 + $0xa0] sm:$0xff]
        %v345 = vld [vmem:[%s2 + $0xa8] sm:$0xff]
        %v346 = vld [vmem:[%s2 + $0xb0] sm:$0xff]
        %v347 = vld [vmem:[%s2 + $0xb8] sm:$0xff]
        %v348 = vld [vmem:[%s2 + $0xc0] sm:$0xff]
        %v349 = vld [vmem:[%s2 + $0xc8] sm:$0xff]
        %v350 = vld [vmem:[%s2 + $0xd0] sm:$0xff]
        %v351 = vld [vmem:[%s2 + $0xd8] sm:$0xff]
        %v352 = vld [vmem:[%s2 + $0xe0] sm:$0xff]
        %v353 = vld [vmem:[%s2 + $0xe8] sm:$0xff]
        %v354 = vld [vmem:[%s2 + $0xf0] sm:$0xff]
        %v355 = vld [vmem:[%s2 + $0xf8] sm:$0xff]
        %v356 = vld [vmem:[%s2 + $0x100] sm:$0xff]
        %v357 = vld [vmem:[%s2 + $0x108] sm:$0xff]
        %v358 = vld [vmem:[%s2 + $0x110] sm:$0xff]
        %v359 = vld [vmem:[%s2 + $0x118] sm:$0xff]
        %v360 = vld [vmem:[%s2 + $0x120] sm:$0xff]
        %v361 = vld [vmem:[%s2 + $0x128] sm:$0xff]
        %v362 = vld [vmem:[%s2 + $0x130] sm:$0xff]
        %v363 = vld [vmem:[%s2 + $0x138] sm:$0xff]
        %v364 = vld [vmem:[%s2 + $0x140] sm:$0xff]
        %v365 = vld [vmem:[%s2 + $0x148] sm:$0xff]
        %v366 = vld [vmem:[%s2 + $0x150] sm:$0xff]
        %v367 = vld [vmem:[%s2 + $0x158] sm:$0xff]
        %v368 = vld [vmem:[%s2 + $0x160] sm:$0xff]
        %v369 = vld [vmem:[%s2 + $0x168] sm:$0xff]
        %v370 = vld [vmem:[%s2 + $0x170] sm:$0xff]
        %v371 = vld [vmem:[%s2 + $0x178] sm:$0xff]
        %v372 = vld [vmem:[%s3] sm:$0x1]
        %v374 = vlaneseq
        %v375 = vshrl.u32 %v374, 7
        %v376 = vsub.s32 0, %v375
        %v377 = vrot.slane %v372, %v376
        %379 = vmatprep.subr.mxu0 0.0
        %380 = vmatpush1.msra.mxu0 %v339
        %381 = vmatprep.subr.mxu0 0.0
        %382 = vmatpush1.msra.mxu0 %v338
        %383 = vmatprep.subr.mxu0 0.0
        %384 = vmatpush1.msra.mxu0 %v337
        %385 = vmatprep.subr.mxu0 0.0
        %386 = vmatpush1.msra.mxu0 %v336
        %387 = vmatprep.subr.mxu0 0.0
        %388 = vmatpush1.msra.mxu0 %v335
        %389 = vmatprep.subr.mxu0 0.0
        %390 = vmatpush1.msra.mxu0 %v334
        %391 = vmatprep.subr.mxu0 0.0
        %392 = vmatpush1.msra.mxu0 %v333
        %393 = vmatprep.subr.mxu0 0.0
        %394 = vmatpush1.msra.mxu0 %v332
        %395 = vmatprep.subr.mxu0 0.0
        %396 = vmatpush1.msra.mxu0 %v331
        %397 = vmatprep.subr.mxu0 0.0
        %398 = vmatpush1.msra.mxu0 %v330
        %399 = vmatprep.subr.mxu0 0.0
        %400 = vmatpush1.msra.mxu0 %v329
        %401 = vmatprep.subr.mxu0 0.0
        %402 = vmatpush1.msra.mxu0 %v328
        %403 = vmatprep.subr.mxu0 0.0
        %404 = vmatpush1.msra.mxu0 %v327
        %405 = vmatprep.subr.mxu0 0.0
        %406 = vmatpush1.msra.mxu0 %v326
        %407 = vmatprep.subr.mxu0 0.0
        %408 = vmatpush1.msra.mxu0 %v325
        %409 = vmatprep.subr.mxu0 0.0
        %410 = vmatpush1.msra.mxu0 %v324
        %411 = vmatprep.subr.mxu0 0.0
        %412 = vmatpush2.msra.mxu0 %v355
        %413 = vmatprep.subr.mxu0 0.0
        %414 = vmatpush2.msra.mxu0 %v354
        %415 = vmatprep.subr.mxu0 0.0
        %416 = vmatpush2.msra.mxu0 %v353
        %417 = vmatprep.subr.mxu0 0.0
        %418 = vmatpush2.msra.mxu0 %v352
        %419 = vmatprep.subr.mxu0 0.0
        %420 = vmatpush2.msra.mxu0 %v351
        %421 = vmatprep.subr.mxu0 0.0
        %422 = vmatpush2.msra.mxu0 %v350
        %423 = vmatprep.subr.mxu0 0.0
        %424 = vmatpush2.msra.mxu0 %v349
        %425 = vmatprep.subr.mxu0 0.0
        %426 = vmatpush2.msra.mxu0 %v348
        %427 = vmatprep.subr.mxu0 0.0
        %428 = vmatpush2.msra.mxu0 %v347
        %429 = vmatprep.subr.mxu0 0.0
        %430 = vmatpush2.msra.mxu0 %v346
        %431 = vmatprep.subr.mxu0 0.0
        %432 = vmatpush2.msra.mxu0 %v345
        %433 = vmatprep.subr.mxu0 0.0
        %434 = vmatpush2.msra.mxu0 %v344
        %435 = vmatprep.subr.mxu0 0.0
        %436 = vmatpush2.msra.mxu0 %v343
        %437 = vmatprep.subr.mxu0 0.0
        %438 = vmatpush2.msra.mxu0 %v342
        %439 = vmatprep.subr.mxu0 0.0
        %440 = vmatpush2.msra.mxu0 %v341
        %441 = vmatprep.subr.mxu0 0.0
        %442 = vmatpush2.msra.mxu0 %v340
        %443 = vmatprep.mubr.f32.mxu0 %v322
        %444 = vmatmul.mubr.f32.gmra.mxu0 %v321
        %v445 = vpop.f32.mrf.mxu0
        %v446 = vadd.f32 %v377, %v445
        %v447 = vpop.f32.mrf.mxu0
        %448 = vdwg.mxu0
        %449 = vmatprep.subr.mxu0 0.0
        %450 = vmatpush1.msra.mxu0 %v371
        %451 = vmatprep.subr.mxu0 0.0
        %452 = vmatpush1.msra.mxu0 %v370
        %453 = vmatprep.subr.mxu0 0.0
        %454 = vmatpush1.msra.mxu0 %v369
        %455 = vmatprep.subr.mxu0 0.0
        %456 = vmatpush1.msra.mxu0 %v368
        %457 = vmatprep.subr.mxu0 0.0
        %458 = vmatpush1.msra.mxu0 %v367
        %459 = vmatprep.subr.mxu0 0.0
        %460 = vmatpush1.msra.mxu0 %v366
        %461 = vmatprep.subr.mxu0 0.0
        %462 = vmatpush1.msra.mxu0 %v365
        %463 = vmatprep.subr.mxu0 0.0
        %464 = vmatpush1.msra.mxu0 %v364
        %465 = vmatprep.subr.mxu0 0.0
        %466 = vmatpush1.msra.mxu0 %v363
        %467 = vmatprep.subr.mxu0 0.0
        %468 = vmatpush1.msra.mxu0 %v362
        %469 = vmatprep.subr.mxu0 0.0
        %470 = vmatpush1.msra.mxu0 %v361
        %471 = vmatprep.subr.mxu0 0.0
        %472 = vmatpush1.msra.mxu0 %v360
        %473 = vmatprep.subr.mxu0 0.0
        %474 = vmatpush1.msra.mxu0 %v359
        %475 = vmatprep.subr.mxu0 0.0
        %476 = vmatpush1.msra.mxu0 %v358
        %477 = vmatprep.subr.mxu0 0.0
        %478 = vmatpush1.msra.mxu0 %v357
        %479 = vmatprep.subr.mxu0 0.0
        %480 = vmatpush1.msra.mxu0 %v356
        %481 = vmatprep.subr.mxu0 0.0
        %482 = vmatpush2.msra.mxu0 0.0
        %483 = vmatprep.subr.mxu0 0.0
        %484 = vmatpush2.msra.mxu0 0.0
        %485 = vmatprep.subr.mxu0 0.0
        %486 = vmatpush2.msra.mxu0 0.0
        %487 = vmatprep.subr.mxu0 0.0
        %488 = vmatpush2.msra.mxu0 0.0
        %489 = vmatprep.subr.mxu0 0.0
        %490 = vmatpush2.msra.mxu0 0.0
        %491 = vmatprep.subr.mxu0 0.0
        %492 = vmatpush2.msra.mxu0 0.0
        %493 = vmatprep.subr.mxu0 0.0
        %494 = vmatpush2.msra.mxu0 0.0
        %495 = vmatprep.subr.mxu0 0.0
        %496 = vmatpush2.msra.mxu0 0.0
        %497 = vmatprep.subr.mxu0 0.0
        %498 = vmatpush2.msra.mxu0 0.0
        %499 = vmatprep.subr.mxu0 0.0
        %500 = vmatpush2.msra.mxu0 0.0
        %501 = vmatprep.subr.mxu0 0.0
        %502 = vmatpush2.msra.mxu0 0.0
        %503 = vmatprep.subr.mxu0 0.0
        %504 = vmatpush2.msra.mxu0 0.0
        %505 = vmatprep.subr.mxu0 0.0
        %506 = vmatpush2.msra.mxu0 0.0
        %507 = vmatprep.subr.mxu0 0.0
        %508 = vmatpush2.msra.mxu0 0.0
        %509 = vmatprep.subr.mxu0 0.0
        %510 = vmatpush2.msra.mxu0 0.0
        %511 = vmatprep.subr.mxu0 0.0
        %512 = vmatpush2.msra.mxu0 0.0
        %513 = vmatprep.mubr.f32.mxu0 0.0
        %514 = vmatmul.mubr.f32.gmra.mxu0 %v323
        %v515 = vpop.f32.mrf.mxu0
        %v516 = vadd.f32 %v446, %v515
        %v517 = vpop.f32.mrf.mxu0
        %518 = vdwg.mxu0
        %v519 = vxor.u32 %v516, 2147483648
        %v520 = vmul.f32 %v519, 1.442695
        %v521 = vpow.pop %v520
        %v522 = vadd.f32 %v521, 1.0
        %v523 = vrcp.pop %v522
        %v524 = vmul.f32 1.0, %v523
        %526 = vrot.lane.b32.xlu0 %v524, 80
        %v527 = vpop.permute.xlu0 %526
        %v529 = vmax.f32 %v524, %v527
        %531 = vrot.lane.b32.xlu0 %v529, 104
        %v532 = vpop.permute.xlu0 %531
        %v534 = vmax.f32 %v529, %v532
        %535 = vrot.lane.b32.xlu0 %v524, 56
        %v536 = vpop.permute.xlu0 %535
        %vm538 = vcmask 195584
        %v539 = vsel %vm538, %v534, %v536
        %v540 = vld [vmem:[%s4] sm:$0xff]
        %v541 = vld [vmem:[%s4 + $0x8] sm:$0xff]
        %v542 = vld [vmem:[%s4 + $0x10] sm:$0xff]
        %v543 = vld [vmem:[%s4 + $0x18] sm:$0xff]
        %v544 = vld [vmem:[%s4 + $0x20] sm:$0xff]
        %v545 = vld [vmem:[%s4 + $0x28] sm:$0xff]
        %v546 = vld [vmem:[%s4 + $0x30] sm:$0xff]
        %v547 = vld [vmem:[%s4 + $0x38] sm:$0xff]
        %v548 = vld [vmem:[%s4 + $0x40] sm:$0xff]
        %v549 = vld [vmem:[%s4 + $0x48] sm:$0xff]
        %vm550 = vcmask 326656
        %v552 = vsel %vm550, %v539, 0
        %554 = vmatprep.subr.mxu0 0.0
        %555 = vmatpush1.msra.mxu0 0.0
        %556 = vmatprep.subr.mxu0 0.0
        %557 = vmatpush1.msra.mxu0 0.0
        %558 = vmatprep.subr.mxu0 0.0
        %559 = vmatpush1.msra.mxu0 0.0
        %560 = vmatprep.subr.mxu0 0.0
        %561 = vmatpush1.msra.mxu0 0.0
        %562 = vmatprep.subr.mxu0 0.0
        %563 = vmatpush1.msra.mxu0 0.0
        %564 = vmatprep.subr.mxu0 0.0
        %565 = vmatpush1.msra.mxu0 0.0
        %566 = vmatprep.subr.mxu0 0.0
        %567 = vmatpush1.msra.mxu0 0.0
        %568 = vmatprep.subr.mxu0 0.0
        %569 = vmatpush1.msra.mxu0 0.0
        %570 = vmatprep.subr.mxu0 0.0
        %571 = vmatpush1.msra.mxu0 0.0
        %572 = vmatprep.subr.mxu0 0.0
        %573 = vmatpush1.msra.mxu0 0.0
        %574 = vmatprep.subr.mxu0 0.0
        %575 = vmatpush1.msra.mxu0 0.0
        %576 = vmatprep.subr.mxu0 %v549
        %577 = vmatpush1.msra.mxu0 %v548
        %578 = vmatprep.subr.mxu0 %v547
        %579 = vmatpush1.msra.mxu0 %v546
        %580 = vmatprep.subr.mxu0 %v545
        %581 = vmatpush1.msra.mxu0 %v544
        %582 = vmatprep.subr.mxu0 %v543
        %583 = vmatpush1.msra.mxu0 %v542
        %584 = vmatprep.subr.mxu0 %v541
        %585 = vmatpush1.msra.mxu0 %v540
        %586 = vmatprep.subr.mxu0 0.0
        %587 = vmatpush2.msra.mxu0 0.0
        %588 = vmatprep.subr.mxu0 0.0
        %589 = vmatpush2.msra.mxu0 0.0
        %590 = vmatprep.subr.mxu0 0.0
        %591 = vmatpush2.msra.mxu0 0.0
        %592 = vmatprep.subr.mxu0 0.0
        %593 = vmatpush2.msra.mxu0 0.0
        %594 = vmatprep.subr.mxu0 0.0
        %595 = vmatpush2.msra.mxu0 0.0
        %596 = vmatprep.subr.mxu0 0.0
        %597 = vmatpush2.msra.mxu0 0.0
        %598 = vmatprep.subr.mxu0 0.0
        %599 = vmatpush2.msra.mxu0 0.0
        %600 = vmatprep.subr.mxu0 0.0
        %601 = vmatpush2.msra.mxu0 0.0
        %602 = vmatprep.subr.mxu0 0.0
        %603 = vmatpush2.msra.mxu0 0.0
        %604 = vmatprep.subr.mxu0 0.0
        %605 = vmatpush2.msra.mxu0 0.0
        %606 = vmatprep.subr.mxu0 0.0
        %607 = vmatpush2.msra.mxu0 0.0
        %608 = vmatprep.subr.mxu0 0.0
        %609 = vmatpush2.msra.mxu0 0.0
        %610 = vmatprep.subr.mxu0 0.0
        %611 = vmatpush2.msra.mxu0 0.0
        %612 = vmatprep.subr.mxu0 0.0
        %613 = vmatpush2.msra.mxu0 0.0
        %614 = vmatprep.subr.mxu0 0.0
        %615 = vmatpush2.msra.mxu0 0.0
        %616 = vmatprep.subr.mxu0 0.0
        %617 = vmatpush2.msra.mxu0 0.0
        %618 = vmatprep.mubr.f32.mxu0 0.0
        %619 = vmatmul.mubr.f32.gmra.mxu0 %v552
        %v620 = vpop.f32.mrf.mxu0
        %v621 = vadd.f32 0.0, %v620
        %v622 = vpop.f32.mrf.mxu0
        %v623 = vadd.f32 0.0, %v622
        %624 = vdwg.mxu0
        %626 = vrot.lane.b32.xlu0 %v621, 64
        %v627 = vpop.permute.xlu0 %626
        %v629 = vmul.f32 %v621, %v627
        %v630 = vmul.f32 %v629, %v623
        %632 = vrot.lane.b32.xlu0 %v630, 96
        %v633 = vpop.permute.xlu0 %632
        %v635 = vmax.f32 %v630, %v633
        %637 = vrot.lane.b32.xlu0 %v635, 112
        %v638 = vpop.permute.xlu0 %637
        %v640 = vmax.f32 %v635, %v638
        %v641 = vld [vmem:[%s5] sm:$0xff]
        %v642 = vld [vmem:[%s5 + $0x8] sm:$0xff]
        %vm643 = vcmask 130048
        %v645 = vsel %vm643, %v640, 0
        %647 = vmatprep.subr.mxu0 0.0
        %648 = vmatpush1.msra.mxu0 0.0
        %649 = vmatprep.subr.mxu0 0.0
        %650 = vmatpush1.msra.mxu0 0.0
        %651 = vmatprep.subr.mxu0 0.0
        %652 = vmatpush1.msra.mxu0 0.0
        %653 = vmatprep.subr.mxu0 0.0
        %654 = vmatpush1.msra.mxu0 0.0
        %655 = vmatprep.subr.mxu0 0.0
        %656 = vmatpush1.msra.mxu0 0.0
        %657 = vmatprep.subr.mxu0 0.0
        %658 = vmatpush1.msra.mxu0 0.0
        %659 = vmatprep.subr.mxu0 0.0
        %660 = vmatpush1.msra.mxu0 0.0
        %661 = vmatprep.subr.mxu0 0.0
        %662 = vmatpush1.msra.mxu0 0.0
        %663 = vmatprep.subr.mxu0 0.0
        %664 = vmatpush1.msra.mxu0 0.0
        %665 = vmatprep.subr.mxu0 0.0
        %666 = vmatpush1.msra.mxu0 0.0
        %667 = vmatprep.subr.mxu0 0.0
        %668 = vmatpush1.msra.mxu0 0.0
        %669 = vmatprep.subr.mxu0 0.0
        %670 = vmatpush1.msra.mxu0 0.0
        %671 = vmatprep.subr.mxu0 0.0
        %672 = vmatpush1.msra.mxu0 0.0
        %673 = vmatprep.subr.mxu0 0.0
        %674 = vmatpush1.msra.mxu0 0.0
        %675 = vmatprep.subr.mxu0 0.0
        %676 = vmatpush1.msra.mxu0 %v642
        %677 = vmatprep.subr.mxu0 0.0
        %678 = vmatpush1.msra.mxu0 %v641
        %679 = vmatprep.subr.mxu0 0.0
        %680 = vmatpush2.msra.mxu0 0.0
        %681 = vmatprep.subr.mxu0 0.0
        %682 = vmatpush2.msra.mxu0 0.0
        %683 = vmatprep.subr.mxu0 0.0
        %684 = vmatpush2.msra.mxu0 0.0
        %685 = vmatprep.subr.mxu0 0.0
        %686 = vmatpush2.msra.mxu0 0.0
        %687 = vmatprep.subr.mxu0 0.0
        %688 = vmatpush2.msra.mxu0 0.0
        %689 = vmatprep.subr.mxu0 0.0
        %690 = vmatpush2.msra.mxu0 0.0
        %691 = vmatprep.subr.mxu0 0.0
        %692 = vmatpush2.msra.mxu0 0.0
        %693 = vmatprep.subr.mxu0 0.0
        %694 = vmatpush2.msra.mxu0 0.0
        %695 = vmatprep.subr.mxu0 0.0
        %696 = vmatpush2.msra.mxu0 0.0
        %697 = vmatprep.subr.mxu0 0.0
        %698 = vmatpush2.msra.mxu0 0.0
        %699 = vmatprep.subr.mxu0 0.0
        %700 = vmatpush2.msra.mxu0 0.0
        %701 = vmatprep.subr.mxu0 0.0
        %702 = vmatpush2.msra.mxu0 0.0
        %703 = vmatprep.subr.mxu0 0.0
        %704 = vmatpush2.msra.mxu0 0.0
        %705 = vmatprep.subr.mxu0 0.0
        %706 = vmatpush2.msra.mxu0 0.0
        %707 = vmatprep.subr.mxu0 0.0
        %708 = vmatpush2.msra.mxu0 0.0
        %709 = vmatprep.subr.mxu0 0.0
        %710 = vmatpush2.msra.mxu0 0.0
        %711 = vmatprep.mubr.f32.mxu0 0.0
        %712 = vmatmul.mubr.f32.gmra.mxu0 %v645
        %v713 = vpop.f32.mrf.mxu0
        %v714 = vadd.f32 0.0, %v713
        %v715 = vpop.f32.mrf.mxu0
        %716 = vdwg.mxu0
        %718 = vrot.lane.b32.xlu0 %v714, 96
        %v719 = vpop.permute.xlu0 %718
        %v721 = vmul.f32 %v714, %v719
        %v722 = vld [vmem:[%s6] sm:$0xff]
        %v723 = vld [vmem:[%s6 + $0x8] sm:$0xff]
        %v724 = vld [vmem:[%s6 + $0x10] sm:$0xff]
        %v725 = vld [vmem:[%s6 + $0x18] sm:$0xff]
        %v726 = vld [vmem:[%s7] sm:$0x1]
        %v728 = vlaneseq
        %v729 = vshrl.u32 %v728, 7
        %v730 = vsub.s32 0, %v729
        %v731 = vrot.slane %v726, %v730
        %vm733 = vcmask 261120
        %v735 = vsel %vm733, %v721, 0
        %737 = vmatprep.subr.mxu0 0.0
        %738 = vmatpush1.msra.mxu0 0.0
        %739 = vmatprep.subr.mxu0 0.0
        %740 = vmatpush1.msra.mxu0 0.0
        %741 = vmatprep.subr.mxu0 0.0
        %742 = vmatpush1.msra.mxu0 0.0
        %743 = vmatprep.subr.mxu0 0.0
        %744 = vmatpush1.msra.mxu0 0.0
        %745 = vmatprep.subr.mxu0 0.0
        %746 = vmatpush1.msra.mxu0 0.0
        %747 = vmatprep.subr.mxu0 0.0
        %748 = vmatpush1.msra.mxu0 0.0
        %749 = vmatprep.subr.mxu0 0.0
        %750 = vmatpush1.msra.mxu0 0.0
        %751 = vmatprep.subr.mxu0 0.0
        %752 = vmatpush1.msra.mxu0 0.0
        %753 = vmatprep.subr.mxu0 0.0
        %754 = vmatpush1.msra.mxu0 0.0
        %755 = vmatprep.subr.mxu0 0.0
        %756 = vmatpush1.msra.mxu0 0.0
        %757 = vmatprep.subr.mxu0 0.0
        %758 = vmatpush1.msra.mxu0 0.0
        %759 = vmatprep.subr.mxu0 0.0
        %760 = vmatpush1.msra.mxu0 0.0
        %761 = vmatprep.subr.mxu0 0.0
        %762 = vmatpush1.msra.mxu0 %v725
        %763 = vmatprep.subr.mxu0 0.0
        %764 = vmatpush1.msra.mxu0 %v724
        %765 = vmatprep.subr.mxu0 0.0
        %766 = vmatpush1.msra.mxu0 %v723
        %767 = vmatprep.subr.mxu0 0.0
        %768 = vmatpush1.msra.mxu0 %v722
        %769 = vmatprep.subr.mxu0 0.0
        %770 = vmatpush2.msra.mxu0 0.0
        %771 = vmatprep.subr.mxu0 0.0
        %772 = vmatpush2.msra.mxu0 0.0
        %773 = vmatprep.subr.mxu0 0.0
        %774 = vmatpush2.msra.mxu0 0.0
        %775 = vmatprep.subr.mxu0 0.0
        %776 = vmatpush2.msra.mxu0 0.0
        %777 = vmatprep.subr.mxu0 0.0
        %778 = vmatpush2.msra.mxu0 0.0
        %779 = vmatprep.subr.mxu0 0.0
        %780 = vmatpush2.msra.mxu0 0.0
        %781 = vmatprep.subr.mxu0 0.0
        %782 = vmatpush2.msra.mxu0 0.0
        %783 = vmatprep.subr.mxu0 0.0
        %784 = vmatpush2.msra.mxu0 0.0
        %785 = vmatprep.subr.mxu0 0.0
        %786 = vmatpush2.msra.mxu0 0.0
        %787 = vmatprep.subr.mxu0 0.0
        %788 = vmatpush2.msra.mxu0 0.0
        %789 = vmatprep.subr.mxu0 0.0
        %790 = vmatpush2.msra.mxu0 0.0
        %791 = vmatprep.subr.mxu0 0.0
        %792 = vmatpush2.msra.mxu0 0.0
        %793 = vmatprep.subr.mxu0 0.0
        %794 = vmatpush2.msra.mxu0 0.0
        %795 = vmatprep.subr.mxu0 0.0
        %796 = vmatpush2.msra.mxu0 0.0
        %797 = vmatprep.subr.mxu0 0.0
        %798 = vmatpush2.msra.mxu0 0.0
        %799 = vmatprep.subr.mxu0 0.0
        %800 = vmatpush2.msra.mxu0 0.0
        %801 = vmatprep.mubr.f32.mxu0 0.0
        %802 = vmatmul.mubr.f32.gmra.mxu0 %v735
        %v803 = vpop.f32.mrf.mxu0
        %v804 = vadd.f32 %v731, %v803
        %v805 = vpop.f32.mrf.mxu0
        %806 = vdwg.mxu0
        %vm807 = vcmp.ge.f32.partialorder %v804, 0.0
        %v808 = vmul.f32 %v804, 0.01
        %v809 = vsel %vm807, %v804, %v808
        %811 = vrot.lane.b32.xlu0 %v809, 64
        %v812 = vpop.permute.xlu0 %811
        %v814 = vadd.f32 %v809, %v812
        %v815 = vld [vmem:[%s320] sm:$0xff]
        %v816 = vadd.f32 %v814, %v815
        %v817 = vmul.f32 %v816, 0.33333334
        %vm818 = vcmask 523264
        %819 = vst.msk [vmem:[%s311] sm:$0xff] %vm818, %v817
        %s820 = sand.u32 %s208, 1
        %s821 = scalar_lea.sflag [#allocation3], %s820
        %s822 = sand.u32 %s208, 1
        %s823 = smul.addr %s822, 8
        %s824 = scalar_lea.vmem [#allocation2], %s823
        // Predicated region
        $region53: #{tpu_custom_call.1} parent=51 // pred_check
          %p825 = pneg %p218
        $region54: #{tpu_custom_call.1} parent=51 // pred_check_branch
          %827 = sbr.rel (%p825) target = $region56
        $region55: #{tpu_custom_call.1} parent=51 // pred_region
          %s829 = ssub.s32 128, 128
          %830 = vsyncadd %s821, %s829
          %s831 = smul.addr %s22, 128
          %s832 = scalar_lea.hbm %s8, %s831
          %s834 = sshll.u32 %s824, 4
          %s835 = int_to_ptr.vmem [resolvable:$true] %s834
          %837 = dma.vmem_to_hbm [thread:$0]  %s835, 128, %s832, %s821
        $region56: #{tpu_custom_call.1} parent=51 // pred_fallthru
          _
      $region52: #{tpu_custom_call.1} parent=5 // pred_fallthru
        _
      %p838 = scmp.le.s32.totalorder 2, %s17
      // Predicated region
      $region57: #{tpu_custom_call.1} parent=5 // pred_check
        %p839 = pneg %p838
      $region58: #{tpu_custom_call.1} parent=5 // pred_check_branch
        %841 = sbr.rel (%p839) target = $region60
      $region59: #{tpu_custom_call.1} parent=5 // pred_region
        %s842 = ssub.s32 %s17, 2
        // Predicated region
        $region61: #{tpu_custom_call.1} parent=59 // pred_check
          %p843 = pneg %p224
        $region62: #{tpu_custom_call.1} parent=59 // pred_check_branch
          %845 = sbr.rel (%p843) target = $region64
        $region63: #{tpu_custom_call.1} parent=59 // pred_region
          %s846 = sand.u32 %s209, 1
          %s847 = scalar_lea.sflag [#allocation3], %s846
          %s848 = sand.u32 %s209, 1
          %s849 = smul.addr %s848, 8
          %s850 = scalar_lea.vmem [#allocation2], %s849
          %851 = dma.done %s847, 128
        $region64: #{tpu_custom_call.1} parent=59 // pred_fallthru
          _
      $region60: #{tpu_custom_call.1} parent=5 // pred_fallthru
        _
    $region6: #{tpu_custom_call.1} parent=1 // loop_footer
      %s21 = sadd.s32 1, %s17
    $region7: #{tpu_custom_call.1} parent=1 // loop_footer_branch
      %16 = sbr.rel target = $region3
    $region8: #{tpu_custom_call.1} parent=1 // loop_exit
      _
    %852 = vsyncpa [#allocation3], 1
    %s853 = scalar_lea.sflag [#allocation3], 1
    %854 = vsyncpa %s853, 1

</llo_original>
